<compile_context>
chip_gen: v5e
topology: v5e:2x2
jax: 0.10.0
libtpu: 0.0.40
codegen_flags: <defaults>
</compile_context>

<pallas_src>
import functools

import jax
import jax.numpy as jnp
from jax.experimental import pallas as pl
from jax.experimental.pallas import tpu as pltpu


def _round_up(x, m):
    return ((x + m - 1) // m) * m


def _actor_kernel(obs_ref, w0_ref, b0_ref, w1_ref, b1_ref, w2_ref, b2_ref,
                  out_ref, *, action_dim, log_std_min, log_std_max):
    cdt = w0_ref.dtype  # compute dtype for MXU operands (bf16)

    x = obs_ref[...].astype(cdt)

    # hidden layer 0: Linear + ReLU  (bf16 operands, f32 accumulate)
    h = jnp.dot(x, w0_ref[...], preferred_element_type=jnp.float32)
    h = jnp.maximum(h + b0_ref[...].astype(jnp.float32), 0.0)

    # hidden layer 1: Linear + ReLU
    h = jnp.dot(h.astype(cdt), w1_ref[...], preferred_element_type=jnp.float32)
    h = jnp.maximum(h + b1_ref[...].astype(jnp.float32), 0.0)

    # output layer: Linear -> (TB, 2*action_dim), lane-packed [mean | log_std]
    out = jnp.dot(h.astype(cdt), w2_ref[...], preferred_element_type=jnp.float32)
    out = out + b2_ref[...].astype(jnp.float32)

    # Clamp only the log_std lanes; keep a single dense store.
    lane = jax.lax.broadcasted_iota(jnp.int32, out.shape, dimension=1)
    clamped = jnp.clip(out, log_std_min, log_std_max)
    out_ref[...] = jnp.where(lane >= action_dim, clamped, out).astype(out_ref.dtype)


def diag_gaussian_actor_forward(obs, params, log_std_bounds, *, block_batch=512):
    """Returns (mean, log_std), matching DiagGaussianActor.forward."""
    w0, b0, w1, b1, w2, b2 = params
    B, obs_dim = obs.shape
    hidden = w0.shape[1]
    out_dim = w2.shape[1]
    action_dim = out_dim // 2
    log_std_min, log_std_max = log_std_bounds

    # Batch tile: multiple of 8 sublanes, capped by block_batch (sized well under
    # 64 MiB VMEM for v7x even double-buffered).
    tb = _round_up(min(block_batch, _round_up(B, 8)), 8)
    b_pad = _round_up(B, tb)
    if b_pad != B:
        obs = jnp.pad(obs, ((0, b_pad - B), (0, 0)))
    grid = (b_pad // tb,)

    compute_dtype = w0.dtype
    obs_c = obs.astype(compute_dtype)

    kernel = functools.partial(
        _actor_kernel,
        action_dim=action_dim,
        log_std_min=float(log_std_min),
        log_std_max=float(log_std_max),
    )

    flops = 2 * b_pad * (obs_dim * hidden + hidden * hidden + hidden * out_dim)
    bytes_accessed = (
        obs_c.size * obs_c.dtype.itemsize
        + sum(int(p.size) * p.dtype.itemsize for p in params)
        + b_pad * out_dim * 4
    )

    resident = lambda i: (0, 0)  # weights/biases: same block every grid step
    out = pl.pallas_call(
        kernel,
        out_shape=jax.ShapeDtypeStruct((b_pad, out_dim), jnp.float32),
        grid=grid,
        in_specs=[
            pl.BlockSpec((tb, obs_dim), lambda i: (i, 0)),
            pl.BlockSpec((obs_dim, hidden), resident),
            pl.BlockSpec((1, hidden), resident),
            pl.BlockSpec((hidden, hidden), resident),
            pl.BlockSpec((1, hidden), resident),
            pl.BlockSpec((hidden, out_dim), resident),
            pl.BlockSpec((1, out_dim), resident),
        ],
        out_specs=pl.BlockSpec((tb, out_dim), lambda i: (i, 0)),
        compiler_params=pltpu.CompilerParams(dimension_semantics=("parallel",)),
        cost_estimate=pl.CostEstimate(
            flops=flops, transcendentals=0, bytes_accessed=bytes_accessed),
    )(obs_c, w0, b0, w1, b1, w2, b2)

    out = out[:B]
    mean = out[:, :action_dim]
    log_std = out[:, action_dim:]
    return mean, log_std


def init_params(key, obs_dim, hidden_dim, action_dim, dtype=jnp.bfloat16):
    """Deterministic synthetic init (stand-in for weight_init / orthogonal)."""
    ks = jax.random.split(key, 3)
    scale = 0.1

    def lin(kw, in_d, out_d):
        # stored as (in_dim, out_dim), i.e. transpose of nn.Linear.weight
        w = (scale * jax.random.normal(kw, (in_d, out_d), dtype=jnp.float32)).astype(dtype)
        b = jnp.zeros((1, out_d), dtype=jnp.float32)
        return w, b

    w0, b0 = lin(ks[0], obs_dim, hidden_dim)
    w1, b1 = lin(ks[1], hidden_dim, hidden_dim)
    w2, b2 = lin(ks[2], hidden_dim, 2 * action_dim)
    return (w0, b0, w1, b1, w2, b2)


def _reference_forward(obs, params, log_std_bounds):
    """Pure-JAX reference replicating the kernel's precision path."""
    w0, b0, w1, b1, w2, b2 = params
    cdt = w0.dtype
    x = obs.astype(cdt)
    h = jnp.dot(x, w0, preferred_element_type=jnp.float32) + b0.astype(jnp.float32)
    h = jnp.maximum(h, 0.0)
    h = jnp.dot(h.astype(cdt), w1, preferred_element_type=jnp.float32) + b1.astype(jnp.float32)
    h = jnp.maximum(h, 0.0)
    out = jnp.dot(h.astype(cdt), w2, preferred_element_type=jnp.float32) + b2.astype(jnp.float32)
    action_dim = w2.shape[1] // 2
    mean = out[:, :action_dim]
    log_std = jnp.clip(out[:, action_dim:], log_std_bounds[0], log_std_bounds[1])
    return mean, log_std


if __name__ == "__main__":
    # Small shapes consistent with the module (hidden_depth=2). hidden_dim=128
    # keeps lanes full; batch=30 with block_batch=16 exercises tiling + padding.
    batch = 30
    obs_dim = 16
    hidden_dim = 128
    action_dim = 4
    log_std_bounds = (-5.0, 2.0)

    key = jax.random.PRNGKey(0)
    k_obs, k_par = jax.random.split(key)
    obs = jax.random.normal(k_obs, (batch, obs_dim), dtype=jnp.float32)
    params = init_params(k_par, obs_dim, hidden_dim, action_dim)

    mean, log_std = diag_gaussian_actor_forward(
        obs, params, log_std_bounds, block_batch=16)
    jax.block_until_ready((mean, log_std))

    mean_ref, log_std_ref = _reference_forward(obs, params, log_std_bounds)
    assert mean.shape == (batch, action_dim) and log_std.shape == (batch, action_dim)
    assert jnp.allclose(mean, mean_ref, atol=1e-3, rtol=1e-3)
    assert jnp.allclose(log_std, log_std_ref, atol=1e-3, rtol=1e-3)
    assert bool(jnp.all(log_std >= log_std_bounds[0])) and bool(
        jnp.all(log_std <= log_std_bounds[1]))

    print("KERNEL_OK")
</pallas_src>

<mosaic_0001>
module attributes {stable_mosaic.version = 11 : i64} {
  func.func @_actor_kernel(%arg0: i32, %arg1: memref<16x16xbf16, #tpu.memory_space<vmem>>, %arg2: memref<16x128xbf16, #tpu.memory_space<vmem>>, %arg3: memref<1x128xf32, #tpu.memory_space<vmem>>, %arg4: memref<128x128xbf16, #tpu.memory_space<vmem>>, %arg5: memref<1x128xf32, #tpu.memory_space<vmem>>, %arg6: memref<128x8xbf16, #tpu.memory_space<vmem>>, %arg7: memref<1x8xf32, #tpu.memory_space<vmem>>, %arg8: memref<16x8xf32, #tpu.memory_space<vmem>>) attributes {dimension_semantics = [#tpu.dimension_semantics<parallel>], iteration_bounds = array<i64: 2>, scalar_prefetch = 0 : i64, scratch_operands = 0 : i64, tpu.core_type = #tpu.core_type<tc>, window_params = [{transform_indices = @transform_0, window_bounds = array<i64: 16, 16>}, {pipeline_mode = #tpu.pipeline_mode<synchronous>, transform_indices = @transform_1, window_bounds = array<i64: 16, 128>}, {pipeline_mode = #tpu.pipeline_mode<synchronous>, transform_indices = @transform_2, window_bounds = array<i64: 1, 128>}, {pipeline_mode = #tpu.pipeline_mode<synchronous>, transform_indices = @transform_3, window_bounds = array<i64: 128, 128>}, {pipeline_mode = #tpu.pipeline_mode<synchronous>, transform_indices = @transform_4, window_bounds = array<i64: 1, 128>}, {pipeline_mode = #tpu.pipeline_mode<synchronous>, transform_indices = @transform_5, window_bounds = array<i64: 128, 8>}, {pipeline_mode = #tpu.pipeline_mode<synchronous>, transform_indices = @transform_6, window_bounds = array<i64: 1, 8>}, {transform_indices = @transform_7, window_bounds = array<i64: 16, 8>}]} {
    %c0 = arith.constant 0 : index
    %c0_0 = arith.constant 0 : index
    %0 = vector.load %arg1[%c0, %c0_0] : memref<16x16xbf16, #tpu.memory_space<vmem>>, vector<16x16xbf16>
    %c0_1 = arith.constant 0 : index
    %c0_2 = arith.constant 0 : index
    %1 = vector.load %arg2[%c0_1, %c0_2] : memref<16x128xbf16, #tpu.memory_space<vmem>>, vector<16x128xbf16>
    %cst = arith.constant dense<0.000000e+00> : vector<16x128xf32>
    %2 = tpu.matmul %0, %1, %cst {dimension_numbers = #tpu.dot_dimension_numbers<[1], [0], [0], [1], [0, 0, 1, 1], [], []>} : vector<16x16xbf16>, vector<16x128xbf16>, vector<16x128xf32> -> vector<16x128xf32>
    %c0_3 = arith.constant 0 : index
    %c0_4 = arith.constant 0 : index
    %3 = vector.load %arg3[%c0_3, %c0_4] : memref<1x128xf32, #tpu.memory_space<vmem>>, vector<1x128xf32>
    %4 = vector.broadcast %3 : vector<1x128xf32> to vector<16x128xf32>
    %5 = arith.addf %2, %4 : vector<16x128xf32>
    %cst_5 = arith.constant 0.000000e+00 : f32
    %6 = vector.broadcast %cst_5 : f32 to vector<16x128xf32>
    %7 = arith.maximumf %5, %6 : vector<16x128xf32>
    %8 = arith.truncf %7 : vector<16x128xf32> to vector<16x128xbf16>
    %c0_6 = arith.constant 0 : index
    %c0_7 = arith.constant 0 : index
    %9 = vector.load %arg4[%c0_6, %c0_7] : memref<128x128xbf16, #tpu.memory_space<vmem>>, vector<128x128xbf16>
    %cst_8 = arith.constant dense<0.000000e+00> : vector<16x128xf32>
    %10 = tpu.matmul %8, %9, %cst_8 {dimension_numbers = #tpu.dot_dimension_numbers<[1], [0], [0], [1], [0, 0, 1, 1], [], []>} : vector<16x128xbf16>, vector<128x128xbf16>, vector<16x128xf32> -> vector<16x128xf32>
    %c0_9 = arith.constant 0 : index
    %c0_10 = arith.constant 0 : index
    %11 = vector.load %arg5[%c0_9, %c0_10] : memref<1x128xf32, #tpu.memory_space<vmem>>, vector<1x128xf32>
    %12 = vector.broadcast %11 : vector<1x128xf32> to vector<16x128xf32>
    %13 = arith.addf %10, %12 : vector<16x128xf32>
    %cst_11 = arith.constant 0.000000e+00 : f32
    %14 = vector.broadcast %cst_11 : f32 to vector<16x128xf32>
    %15 = arith.maximumf %13, %14 : vector<16x128xf32>
    %16 = arith.truncf %15 : vector<16x128xf32> to vector<16x128xbf16>
    %c0_12 = arith.constant 0 : index
    %c0_13 = arith.constant 0 : index
    %17 = vector.load %arg6[%c0_12, %c0_13] : memref<128x8xbf16, #tpu.memory_space<vmem>>, vector<128x8xbf16>
    %cst_14 = arith.constant dense<0.000000e+00> : vector<16x8xf32>
    %18 = tpu.matmul %16, %17, %cst_14 {dimension_numbers = #tpu.dot_dimension_numbers<[1], [0], [0], [1], [0, 0, 1, 1], [], []>} : vector<16x128xbf16>, vector<128x8xbf16>, vector<16x8xf32> -> vector<16x8xf32>
    %c0_15 = arith.constant 0 : index
    %c0_16 = arith.constant 0 : index
    %19 = vector.load %arg7[%c0_15, %c0_16] : memref<1x8xf32, #tpu.memory_space<vmem>>, vector<1x8xf32>
    %20 = vector.broadcast %19 : vector<1x8xf32> to vector<16x8xf32>
    %21 = arith.addf %18, %20 : vector<16x8xf32>
    %22 = tpu.iota {dimensions = array<i32: 1>} : vector<16x8xi32>
    %cst_17 = arith.constant -5.000000e+00 : f32
    %cst_18 = arith.constant 2.000000e+00 : f32
    %23 = vector.broadcast %cst_17 : f32 to vector<16x8xf32>
    %24 = arith.maximumf %23, %21 : vector<16x8xf32>
    %25 = vector.broadcast %cst_18 : f32 to vector<16x8xf32>
    %26 = arith.minimumf %25, %24 : vector<16x8xf32>
    %c4_i32 = arith.constant 4 : i32
    %27 = vector.broadcast %c4_i32 : i32 to vector<16x8xi32>
    %28 = arith.cmpi sge, %22, %27 : vector<16x8xi32>
    %29 = arith.select %28, %26, %21 : vector<16x8xi1>, vector<16x8xf32>
    %c0_19 = arith.constant 0 : index
    %c0_20 = arith.constant 0 : index
    %30 = vector.load %arg8[%c0_19, %c0_20] : memref<16x8xf32, #tpu.memory_space<vmem>>, vector<16x8xf32>
    tpu.vector_store %arg8[%c0_19, %c0_20], %29 {strides = array<i32>} : memref<16x8xf32, #tpu.memory_space<vmem>>, vector<16x8xf32>,
    return
  }
  func.func @transform_0(%arg0: i32) -> (i32, i32) {
    %c0_i32 = arith.constant 0 : i32
    %c0_i32_0 = arith.constant 0 : i32
    return %arg0, %c0_i32 : i32, i32
  }
  func.func @transform_1(%arg0: i32) -> (i32, i32) {
    %c0_i32 = arith.constant 0 : i32
    %c0_i32_0 = arith.constant 0 : i32
    %c0_i32_1 = arith.constant 0 : i32
    return %c0_i32, %c0_i32_0 : i32, i32
  }
  func.func @transform_2(%arg0: i32) -> (i32, i32) {
    %c0_i32 = arith.constant 0 : i32
    %c0_i32_0 = arith.constant 0 : i32
    %c0_i32_1 = arith.constant 0 : i32
    return %c0_i32, %c0_i32_0 : i32, i32
  }
  func.func @transform_3(%arg0: i32) -> (i32, i32) {
    %c0_i32 = arith.constant 0 : i32
    %c0_i32_0 = arith.constant 0 : i32
    %c0_i32_1 = arith.constant 0 : i32
    return %c0_i32, %c0_i32_0 : i32, i32
  }
  func.func @transform_4(%arg0: i32) -> (i32, i32) {
    %c0_i32 = arith.constant 0 : i32
    %c0_i32_0 = arith.constant 0 : i32
    %c0_i32_1 = arith.constant 0 : i32
    return %c0_i32, %c0_i32_0 : i32, i32
  }
  func.func @transform_5(%arg0: i32) -> (i32, i32) {
    %c0_i32 = arith.constant 0 : i32
    %c0_i32_0 = arith.constant 0 : i32
    %c0_i32_1 = arith.constant 0 : i32
    return %c0_i32, %c0_i32_0 : i32, i32
  }
  func.func @transform_6(%arg0: i32) -> (i32, i32) {
    %c0_i32 = arith.constant 0 : i32
    %c0_i32_0 = arith.constant 0 : i32
    %c0_i32_1 = arith.constant 0 : i32
    return %c0_i32, %c0_i32_0 : i32, i32
  }
  func.func @transform_7(%arg0: i32) -> (i32, i32) {
    %c0_i32 = arith.constant 0 : i32
    %c0_i32_0 = arith.constant 0 : i32
    return %arg0, %c0_i32 : i32, i32
  }
}

</mosaic_0001>

<llo_original>
// kernel: tpu_custom_call.1
$region0: #{tpu_custom_call.1}
  #allocation0 [shape = 'u32[]', space=smem, size = 0x4, offset = 0x4, fixed_abs, tag = 'smem constant byte address 0x4 - core index']
  #allocation1 [shape = 'u32[72,128]{1,0:T(1,128)}', space=vmem, size = 0x9000, scoped, tag = 'internal scratch']
  %s0 = inlined_call_operand.vmem [shape: bf16[32,16], index: 0, kind: input, shape index: {}]
  %s1 = inlined_call_operand.vmem [shape: bf16[16,128], index: 1, kind: input, shape index: {}]
  %s2 = inlined_call_operand.vmem [shape: f32[1,128], index: 2, kind: input, shape index: {}]
  %s3 = inlined_call_operand.vmem [shape: bf16[128,128], index: 3, kind: input, shape index: {}]
  %s4 = inlined_call_operand.vmem [shape: f32[1,128], index: 4, kind: input, shape index: {}]
  %s5 = inlined_call_operand.vmem [shape: bf16[128,8], index: 5, kind: input, shape index: {}]
  %s6 = inlined_call_operand.vmem [shape: f32[1,8], index: 6, kind: input, shape index: {}]
  %s7 = inlined_call_operand.vmem [shape: f32[32,8], index: 7, kind: output, shape index: {}]
  %s8 = sld [smem:[#allocation0]]
  $region61: #{tpu_custom_call.1} parent=0
    _
  %s10 = ssub.s32 1, %s8
  %s11 = scalar_select 0, %s10, %s8
  loop: start=0, step=1, limit=4
  $region2: #{tpu_custom_call.1} parent=0 // loop_pre_header
    _
  $region3: #{tpu_custom_call.1} parent=0 // loop_header
    %s13 = sphi 0, %s17
    %p14 = scmp.ge.s32.totalorder %s13, 4
    %s23 = sphi 0, %s25
    %s26 = sphi 0, %s23
    %s27 = sphi 0, %s26
    %s43 = sphi 0, %s27
    %s47 = sphi 0, %s47
    %s49 = sphi 0, %s47
    %s50 = sphi 0, %s49
    %s64 = sphi 0, %s50
    %s68 = sphi 0, %s68
    %s70 = sphi 0, %s68
    %s71 = sphi 0, %s70
    %s85 = sphi 0, %s71
    %s89 = sphi 0, %s89
    %s91 = sphi 0, %s89
    %s92 = sphi 0, %s91
    %s106 = sphi 0, %s92
    %s110 = sphi 0, %s110
    %s112 = sphi 0, %s110
    %s113 = sphi 0, %s112
    %s127 = sphi 0, %s113
    %s131 = sphi 0, %s131
    %s133 = sphi 0, %s131
    %s134 = sphi 0, %s133
    %s148 = sphi 0, %s134
    %s152 = sphi 0, %s152
    %s154 = sphi 0, %s152
    %s155 = sphi 0, %s154
    %s169 = sphi 0, %s155
    %s175 = sphi 0, %s177
    %s178 = sphi 0, %s175
    %s179 = sphi 0, %s178
    %s195 = sphi 0, %s179
  $region4: #{tpu_custom_call.1} parent=0 // loop_header_branch
    %16 = sbr.rel (%p14) target = $region8
  $region5: #{tpu_custom_call.1} parent=0 // loop_body
    %s18 = ssub.s32 %s13, 1
    %s19 = ssub.s32 %s13, 2
    %s20 = sadd.s32 %s13, 1
    %s21 = ssub.s32 %s13, %s20
    %p22 = scmp.eq.s32.totalorder %s21, 0
    %s24 = sadd.s32 %s23, 1
    %s25 = scalar_select %p22, %s23, %s24
    %p28 = pneg %p22
    %p29 = scmp.eq.s32.totalorder %s13, 1
    %p30 = por %p28, %p29
    %p31 = scmp.ne.s32.totalorder %s23, %s26
    %p32 = scmp.eq.s32.totalorder %s13, 0
    %p33 = por %p31, %p32
    %p34 = scmp.ne.s32.totalorder %s23, %s26
    %p35 = scmp.eq.s32.totalorder %s18, 1
    %p36 = por %p34, %p35
    %p37 = scmp.ne.s32.totalorder %s26, %s27
    %p38 = scmp.eq.s32.totalorder %s18, 0
    %p39 = por %p37, %p38
    %p40 = scmp.ne.s32.totalorder %s26, %s27
    %p41 = scmp.eq.s32.totalorder %s19, 1
    %p42 = por %p40, %p41
    %p44 = scmp.ne.s32.totalorder %s27, %s43
    %p45 = scmp.eq.s32.totalorder %s19, 0
    %p46 = por %p44, %p45
    %s48 = sadd.s32 %s47, 1
    %p51 = scmp.eq.s32.totalorder %s13, 1
    %p52 = scmp.ne.s32.totalorder %s47, %s49
    %p53 = scmp.eq.s32.totalorder %s13, 0
    %p54 = por %p52, %p53
    %p55 = scmp.ne.s32.totalorder %s47, %s49
    %p56 = scmp.eq.s32.totalorder %s18, 1
    %p57 = por %p55, %p56
    %p58 = scmp.ne.s32.totalorder %s49, %s50
    %p59 = scmp.eq.s32.totalorder %s18, 0
    %p60 = por %p58, %p59
    %p61 = scmp.ne.s32.totalorder %s49, %s50
    %p62 = scmp.eq.s32.totalorder %s19, 1
    %p63 = por %p61, %p62
    %p65 = scmp.ne.s32.totalorder %s50, %s64
    %p66 = scmp.eq.s32.totalorder %s19, 0
    %p67 = por %p65, %p66
    %s69 = sadd.s32 %s68, 1
    %p72 = scmp.eq.s32.totalorder %s13, 1
    %p73 = scmp.ne.s32.totalorder %s68, %s70
    %p74 = scmp.eq.s32.totalorder %s13, 0
    %p75 = por %p73, %p74
    %p76 = scmp.ne.s32.totalorder %s68, %s70
    %p77 = scmp.eq.s32.totalorder %s18, 1
    %p78 = por %p76, %p77
    %p79 = scmp.ne.s32.totalorder %s70, %s71
    %p80 = scmp.eq.s32.totalorder %s18, 0
    %p81 = por %p79, %p80
    %p82 = scmp.ne.s32.totalorder %s70, %s71
    %p83 = scmp.eq.s32.totalorder %s19, 1
    %p84 = por %p82, %p83
    %p86 = scmp.ne.s32.totalorder %s71, %s85
    %p87 = scmp.eq.s32.totalorder %s19, 0
    %p88 = por %p86, %p87
    %s90 = sadd.s32 %s89, 1
    %p93 = scmp.eq.s32.totalorder %s13, 1
    %p94 = scmp.ne.s32.totalorder %s89, %s91
    %p95 = scmp.eq.s32.totalorder %s13, 0
    %p96 = por %p94, %p95
    %p97 = scmp.ne.s32.totalorder %s89, %s91
    %p98 = scmp.eq.s32.totalorder %s18, 1
    %p99 = por %p97, %p98
    %p100 = scmp.ne.s32.totalorder %s91, %s92
    %p101 = scmp.eq.s32.totalorder %s18, 0
    %p102 = por %p100, %p101
    %p103 = scmp.ne.s32.totalorder %s91, %s92
    %p104 = scmp.eq.s32.totalorder %s19, 1
    %p105 = por %p103, %p104
    %p107 = scmp.ne.s32.totalorder %s92, %s106
    %p108 = scmp.eq.s32.totalorder %s19, 0
    %p109 = por %p107, %p108
    %s111 = sadd.s32 %s110, 1
    %p114 = scmp.eq.s32.totalorder %s13, 1
    %p115 = scmp.ne.s32.totalorder %s110, %s112
    %p116 = scmp.eq.s32.totalorder %s13, 0
    %p117 = por %p115, %p116
    %p118 = scmp.ne.s32.totalorder %s110, %s112
    %p119 = scmp.eq.s32.totalorder %s18, 1
    %p120 = por %p118, %p119
    %p121 = scmp.ne.s32.totalorder %s112, %s113
    %p122 = scmp.eq.s32.totalorder %s18, 0
    %p123 = por %p121, %p122
    %p124 = scmp.ne.s32.totalorder %s112, %s113
    %p125 = scmp.eq.s32.totalorder %s19, 1
    %p126 = por %p124, %p125
    %p128 = scmp.ne.s32.totalorder %s113, %s127
    %p129 = scmp.eq.s32.totalorder %s19, 0
    %p130 = por %p128, %p129
    %s132 = sadd.s32 %s131, 1
    %p135 = scmp.eq.s32.totalorder %s13, 1
    %p136 = scmp.ne.s32.totalorder %s131, %s133
    %p137 = scmp.eq.s32.totalorder %s13, 0
    %p138 = por %p136, %p137
    %p139 = scmp.ne.s32.totalorder %s131, %s133
    %p140 = scmp.eq.s32.totalorder %s18, 1
    %p141 = por %p139, %p140
    %p142 = scmp.ne.s32.totalorder %s133, %s134
    %p143 = scmp.eq.s32.totalorder %s18, 0
    %p144 = por %p142, %p143
    %p145 = scmp.ne.s32.totalorder %s133, %s134
    %p146 = scmp.eq.s32.totalorder %s19, 1
    %p147 = por %p145, %p146
    %p149 = scmp.ne.s32.totalorder %s134, %s148
    %p150 = scmp.eq.s32.totalorder %s19, 0
    %p151 = por %p149, %p150
    %s153 = sadd.s32 %s152, 1
    %p156 = scmp.eq.s32.totalorder %s13, 1
    %p157 = scmp.ne.s32.totalorder %s152, %s154
    %p158 = scmp.eq.s32.totalorder %s13, 0
    %p159 = por %p157, %p158
    %p160 = scmp.ne.s32.totalorder %s152, %s154
    %p161 = scmp.eq.s32.totalorder %s18, 1
    %p162 = por %p160, %p161
    %p163 = scmp.ne.s32.totalorder %s154, %s155
    %p164 = scmp.eq.s32.totalorder %s18, 0
    %p165 = por %p163, %p164
    %p166 = scmp.ne.s32.totalorder %s154, %s155
    %p167 = scmp.eq.s32.totalorder %s19, 1
    %p168 = por %p166, %p167
    %p170 = scmp.ne.s32.totalorder %s155, %s169
    %p171 = scmp.eq.s32.totalorder %s19, 0
    %p172 = por %p170, %p171
    %s173 = ssub.s32 %s13, %s20
    %p174 = scmp.eq.s32.totalorder %s173, 0
    %s176 = sadd.s32 %s175, 1
    %s177 = scalar_select %p174, %s175, %s176
    %p180 = pneg %p174
    %p181 = scmp.eq.s32.totalorder %s13, 1
    %p182 = por %p180, %p181
    %p183 = scmp.ne.s32.totalorder %s175, %s178
    %p184 = scmp.eq.s32.totalorder %s13, 0
    %p185 = por %p183, %p184
    %p186 = scmp.ne.s32.totalorder %s175, %s178
    %p187 = scmp.eq.s32.totalorder %s18, 1
    %p188 = por %p186, %p187
    %p189 = scmp.ne.s32.totalorder %s178, %s179
    %p190 = scmp.eq.s32.totalorder %s18, 0
    %p191 = por %p189, %p190
    %p192 = scmp.ne.s32.totalorder %s178, %s179
    %p193 = scmp.eq.s32.totalorder %s19, 1
    %p194 = por %p192, %p193
    %p196 = scmp.ne.s32.totalorder %s179, %s195
    %p197 = scmp.eq.s32.totalorder %s19, 0
    %p198 = por %p196, %p197
    %p199 = scmp.le.s32.totalorder 1, %s13
    %p200 = scmp.lt.s32.totalorder %s13, 3
    %p201 = pnand %p199, %p200
    %p202 = pneg %p201
    // Predicated region
    $region9: #{tpu_custom_call.1} parent=5 // pred_check
      _
    $region10: #{tpu_custom_call.1} parent=5 // pred_check_branch
      %204 = sbr.rel (%p201) target = $region12
    $region11: #{tpu_custom_call.1} parent=5 // pred_region
      %s205 = ssub.s32 %s13, 1
      // Predicated region
      $region13: #{tpu_custom_call.1} parent=11 // pred_check
        %p206 = pneg %p60
      $region14: #{tpu_custom_call.1} parent=11 // pred_check_branch
        %208 = sbr.rel (%p206) target = $region16
      $region15: #{tpu_custom_call.1} parent=11 // pred_region
        _
      $region16: #{tpu_custom_call.1} parent=11 // pred_fallthru
        _
      // Predicated region
      $region17: #{tpu_custom_call.1} parent=11 // pred_check
        %p209 = pneg %p81
      $region18: #{tpu_custom_call.1} parent=11 // pred_check_branch
        %211 = sbr.rel (%p209) target = $region20
      $region19: #{tpu_custom_call.1} parent=11 // pred_region
        _
      $region20: #{tpu_custom_call.1} parent=11 // pred_fallthru
        _
      // Predicated region
      $region21: #{tpu_custom_call.1} parent=11 // pred_check
        %p212 = pneg %p102
      $region22: #{tpu_custom_call.1} parent=11 // pred_check_branch
        %214 = sbr.rel (%p212) target = $region24
      $region23: #{tpu_custom_call.1} parent=11 // pred_region
        _
      $region24: #{tpu_custom_call.1} parent=11 // pred_fallthru
        _
      // Predicated region
      $region25: #{tpu_custom_call.1} parent=11 // pred_check
        %p215 = pneg %p123
      $region26: #{tpu_custom_call.1} parent=11 // pred_check_branch
        %217 = sbr.rel (%p215) target = $region28
      $region27: #{tpu_custom_call.1} parent=11 // pred_region
        _
      $region28: #{tpu_custom_call.1} parent=11 // pred_fallthru
        _
      // Predicated region
      $region29: #{tpu_custom_call.1} parent=11 // pred_check
        %p218 = pneg %p144
      $region30: #{tpu_custom_call.1} parent=11 // pred_check_branch
        %220 = sbr.rel (%p218) target = $region32
      $region31: #{tpu_custom_call.1} parent=11 // pred_region
        _
      $region32: #{tpu_custom_call.1} parent=11 // pred_fallthru
        _
      // Predicated region
      $region33: #{tpu_custom_call.1} parent=11 // pred_check
        %p221 = pneg %p165
      $region34: #{tpu_custom_call.1} parent=11 // pred_check_branch
        %223 = sbr.rel (%p221) target = $region36
      $region35: #{tpu_custom_call.1} parent=11 // pred_region
        _
      $region36: #{tpu_custom_call.1} parent=11 // pred_fallthru
        _
    $region12: #{tpu_custom_call.1} parent=5 // pred_fallthru
      _
    %p224 = scmp.lt.s32.totalorder %s13, 2
    // Predicated region
    $region37: #{tpu_custom_call.1} parent=5 // pred_check
      %p225 = pneg %p224
    $region38: #{tpu_custom_call.1} parent=5 // pred_check_branch
      %227 = sbr.rel (%p225) target = $region40
    $region39: #{tpu_custom_call.1} parent=5 // pred_region
      // Predicated region
      $region41: #{tpu_custom_call.1} parent=39 // pred_check
        %p228 = pneg %p33
      $region42: #{tpu_custom_call.1} parent=39 // pred_check_branch
        %230 = sbr.rel (%p228) target = $region44
      $region43: #{tpu_custom_call.1} parent=39 // pred_region
        %s231 = smul.u32 2, %s13
        %p232 = scmp.lt.s32.totalorder %s231, 3
        %s233 = scalar_select %p232, %s231, 3
        %s234 = smul.addr %s233, 4
        %s235 = scalar_lea.vmem %s0, %s234
        %s236 = smul.u32 2, %s13
      $region44: #{tpu_custom_call.1} parent=39 // pred_fallthru
        _
    $region40: #{tpu_custom_call.1} parent=5 // pred_fallthru
      _
    %p237 = scmp.le.s32.totalorder 1, %s13
    %p238 = scmp.lt.s32.totalorder %s13, 3
    %p239 = pnand %p237, %p238
    %p240 = pneg %p239
    // Predicated region
    $region45: #{tpu_custom_call.1} parent=5 // pred_check
      _
    $region46: #{tpu_custom_call.1} parent=5 // pred_check_branch
      %242 = sbr.rel (%p239) target = $region48
    $region47: #{tpu_custom_call.1} parent=5 // pred_region
      %s243 = ssub.s32 %s13, 1
      %s244 = smul.u32 2, %s18
      %p245 = scmp.lt.s32.totalorder %s244, 3
      %s246 = scalar_select %p245, %s244, 3
      %s247 = smul.addr %s246, 4
      %s248 = scalar_lea.vmem %s0, %s247
      %p249 = pneg %p39
      %p250 = pneg %p36
      %p251 = pneg %p60
      %p252 = pneg %p57
      %p253 = pneg %p81
      %p254 = pneg %p78
      %p255 = pneg %p102
      %p256 = pneg %p99
      %p257 = pneg %p123
      %p258 = pneg %p120
      %p259 = pneg %p144
      %p260 = pneg %p141
      %p261 = pneg %p165
      %p262 = pneg %p162
      %p263 = pneg %p191
      %p264 = pneg %p188
      %s265 = smul.u32 2, %s18
      %p266 = scmp.lt.s32.totalorder %s265, 3
      %s267 = scalar_select %p266, %s265, 3
      %s268 = smul.addr %s267, 8
      %s269 = scalar_lea.vmem %s7, %s268
      %s270 = smul.u32 2, %s18
      %p271 = scmp.lt.s32.totalorder %s270, 3
      %s272 = scalar_select %p271, %s270, 3
      %s273 = smul.addr %s272, 4
      %s274 = scalar_lea.vmem %s0, %s273
      %s275 = smul.u32 2, %s18
      %s276 = smul.u32 2, %s18
      %p277 = scmp.lt.s32.totalorder %s276, 3
      %s278 = scalar_select %p277, %s276, 3
      %s279 = smul.addr %s278, 8
      %s280 = scalar_lea.vmem %s7, %s279
      %s281 = smul.u32 2, %s18
      %v283 = vld [vmem:[%s274] sm:$0xf]
      %v284 = vld [vmem:[%s274 + $0x4] sm:$0xf]
      %v285 = vld [vmem:[%s1] sm:$0xf]
      %v286 = vld [vmem:[%s1 + $0x4] sm:$0xf]
      %v287 = vld [vmem:[%s2] sm:$0x1]
      %v289 = vperm.slane %v287, 0
      %v293 = vunpack.c.l.b16 %v283
      %v294 = vunpack.c.l.b16 %v284
      %v295 = vpack.c.b16 %v294, %v293
      %v298 = vunpack.c.l.b16 %v285
      %v299 = vunpack.c.l.b16 %v286
      %v300 = vpack.c.b16 %v299, %v298
      %vm302 = vcmask 130048
      %v304 = vsel %vm302, %v295, 0
      %306 = vmatpush.bf16.msra.mxu0 0
      %307 = vmatpush.bf16.msra.mxu0 0
      %308 = vmatpush.bf16.msra.mxu0 0
      %309 = vmatpush.bf16.msra.mxu0 0
      %310 = vmatpush.bf16.msra.mxu0 0
      %311 = vmatpush.bf16.msra.mxu0 0
      %312 = vmatpush.bf16.msra.mxu0 0
      %313 = vmatpush.bf16.msra.mxu0 %v300
      %314 = vmatmul.bf16.gmra.mxu0 %v304
      %v315 = vpop.f32.mrf.mxu0
      %v316 = vadd.f32 %v289, %v315
      %v317 = vpop.f32.mrf.mxu0
      %v318 = vadd.f32 %v289, %v317
      %319 = vdwg.mxu0
      %v320 = vmax.f32 %v316, 0.0
      %v321 = vmax.f32 %v318, 0.0
      %v322 = vpack.c.bf16 %v321, %v320
      %v323 = vld [vmem:[%s3] sm:$0xf]
      %v324 = vld [vmem:[%s3 + $0x4] sm:$0xf]
      %v325 = vld [vmem:[%s3 + $0x8] sm:$0xf]
      %v326 = vld [vmem:[%s3 + $0xc] sm:$0xf]
      %v327 = vld [vmem:[%s3 + $0x10] sm:$0xf]
      %v328 = vld [vmem:[%s3 + $0x14] sm:$0xf]
      %v329 = vld [vmem:[%s3 + $0x18] sm:$0xf]
      %v330 = vld [vmem:[%s3 + $0x1c] sm:$0xf]
      %v331 = vld [vmem:[%s3 + $0x20] sm:$0xf]
      %v332 = vld [vmem:[%s3 + $0x24] sm:$0xf]
      %v333 = vld [vmem:[%s3 + $0x28] sm:$0xf]
      %v334 = vld [vmem:[%s3 + $0x2c] sm:$0xf]
      %v335 = vld [vmem:[%s3 + $0x30] sm:$0xf]
      %v336 = vld [vmem:[%s3 + $0x34] sm:$0xf]
      %v337 = vld [vmem:[%s3 + $0x38] sm:$0xf]
      %v338 = vld [vmem:[%s3 + $0x3c] sm:$0xf]
      %v339 = vld [vmem:[%s4] sm:$0x1]
      %v341 = vperm.slane %v339, 0
      %v359 = vunpack.c.l.b16 %v323
      %v360 = vunpack.c.l.b16 %v324
      %v361 = vunpack.c.l.b16 %v325
      %v362 = vunpack.c.l.b16 %v326
      %v363 = vunpack.c.l.b16 %v327
      %v364 = vunpack.c.l.b16 %v328
      %v365 = vunpack.c.l.b16 %v329
      %v366 = vunpack.c.l.b16 %v330
      %v367 = vunpack.c.l.b16 %v331
      %v368 = vunpack.c.l.b16 %v332
      %v369 = vunpack.c.l.b16 %v333
      %v370 = vunpack.c.l.b16 %v334
      %v371 = vunpack.c.l.b16 %v335
      %v372 = vunpack.c.l.b16 %v336
      %v373 = vunpack.c.l.b16 %v337
      %v374 = vunpack.c.l.b16 %v338
      %v375 = vpack.c.b16 %v360, %v359
      %v376 = vpack.c.b16 %v362, %v361
      %v377 = vpack.c.b16 %v364, %v363
      %v378 = vpack.c.b16 %v366, %v365
      %v379 = vpack.c.b16 %v368, %v367
      %v380 = vpack.c.b16 %v370, %v369
      %v381 = vpack.c.b16 %v372, %v371
      %v382 = vpack.c.b16 %v374, %v373
      %391 = vmatpush.bf16.msra.mxu0 %v382
      %392 = vmatpush.bf16.msra.mxu0 %v381
      %393 = vmatpush.bf16.msra.mxu0 %v380
      %394 = vmatpush.bf16.msra.mxu0 %v379
      %395 = vmatpush.bf16.msra.mxu0 %v378
      %396 = vmatpush.bf16.msra.mxu0 %v377
      %397 = vmatpush.bf16.msra.mxu0 %v376
      %398 = vmatpush.bf16.msra.mxu0 %v375
      %399 = vmatmul.bf16.gmra.mxu0 %v322
      %v400 = vpop.f32.mrf.mxu0
      %v401 = vadd.f32 %v341, %v400
      %v402 = vpop.f32.mrf.mxu0
      %v403 = vadd.f32 %v341, %v402
      %404 = vdwg.mxu0
      %v405 = vmax.f32 %v401, 0.0
      %v406 = vmax.f32 %v403, 0.0
      %v407 = vpack.c.bf16 %v406, %v405
      %v408 = vld [vmem:[%s5] sm:$0xf]
      %v409 = vld [vmem:[%s5 + $0x4] sm:$0xf]
      %v410 = vld [vmem:[%s5 + $0x8] sm:$0xf]
      %v411 = vld [vmem:[%s5 + $0xc] sm:$0xf]
      %v412 = vld [vmem:[%s5 + $0x10] sm:$0xf]
      %v413 = vld [vmem:[%s5 + $0x14] sm:$0xf]
      %v414 = vld [vmem:[%s5 + $0x18] sm:$0xf]
      %v415 = vld [vmem:[%s5 + $0x1c] sm:$0xf]
      %v416 = vld [vmem:[%s5 + $0x20] sm:$0xf]
      %v417 = vld [vmem:[%s5 + $0x24] sm:$0xf]
      %v418 = vld [vmem:[%s5 + $0x28] sm:$0xf]
      %v419 = vld [vmem:[%s5 + $0x2c] sm:$0xf]
      %v420 = vld [vmem:[%s5 + $0x30] sm:$0xf]
      %v421 = vld [vmem:[%s5 + $0x34] sm:$0xf]
      %v422 = vld [vmem:[%s5 + $0x38] sm:$0xf]
      %v423 = vld [vmem:[%s5 + $0x3c] sm:$0xf]
      %v424 = vld [vmem:[%s6] sm:$0x1]
      %v426 = vperm.slane %v424, 0
      %v444 = vunpack.c.l.b16 %v408
      %v445 = vunpack.c.l.b16 %v409
      %v446 = vunpack.c.l.b16 %v410
      %v447 = vunpack.c.l.b16 %v411
      %v448 = vunpack.c.l.b16 %v412
      %v449 = vunpack.c.l.b16 %v413
      %v450 = vunpack.c.l.b16 %v414
      %v451 = vunpack.c.l.b16 %v415
      %v452 = vunpack.c.l.b16 %v416
      %v453 = vunpack.c.l.b16 %v417
      %v454 = vunpack.c.l.b16 %v418
      %v455 = vunpack.c.l.b16 %v419
      %v456 = vunpack.c.l.b16 %v420
      %v457 = vunpack.c.l.b16 %v421
      %v458 = vunpack.c.l.b16 %v422
      %v459 = vunpack.c.l.b16 %v423
      %v460 = vpack.c.b16 %v445, %v444
      %v461 = vpack.c.b16 %v447, %v446
      %v462 = vpack.c.b16 %v449, %v448
      %v463 = vpack.c.b16 %v451, %v450
      %v464 = vpack.c.b16 %v453, %v452
      %v465 = vpack.c.b16 %v455, %v454
      %v466 = vpack.c.b16 %v457, %v456
      %v467 = vpack.c.b16 %v459, %v458
      %476 = vmatpush.bf16.msra.mxu0 %v467
      %477 = vmatpush.bf16.msra.mxu0 %v466
      %478 = vmatpush.bf16.msra.mxu0 %v465
      %479 = vmatpush.bf16.msra.mxu0 %v464
      %480 = vmatpush.bf16.msra.mxu0 %v463
      %481 = vmatpush.bf16.msra.mxu0 %v462
      %482 = vmatpush.bf16.msra.mxu0 %v461
      %483 = vmatpush.bf16.msra.mxu0 %v460
      %484 = vmatmul.bf16.gmra.mxu0 %v407
      %v485 = vpop.f32.mrf.mxu0
      %v486 = vadd.f32 %v426, %v485
      %v487 = vpop.f32.mrf.mxu0
      %v488 = vadd.f32 %v426, %v487
      %489 = vdwg.mxu0
      %v490 = vlaneseq
      %v491 = vand.u32 %v490, 127
      %v492 = vmax.f32 %v486, -5.0
      %v493 = vmax.f32 %v488, -5.0
      %v494 = vmin.f32 %v492, 2.0
      %v495 = vmin.f32 %v493, 2.0
      %vm496 = vcmp.ge.s32.totalorder %v491, 4
      %v497 = vsel %vm496, %v494, %v486
      %v498 = vsel %vm496, %v495, %v488
      %vm499 = vcmask 64512
      %500 = vst.msk [vmem:[%s280] sm:$0xff] %vm499, %v497
      %501 = vst.msk [vmem:[%s280 + $0x8] sm:$0xff] %vm499, %v498
      %s502 = smul.u32 2, %s18
      %p503 = scmp.lt.s32.totalorder %s502, 3
      %s504 = scalar_select %p503, %s502, 3
      %s505 = smul.addr %s504, 8
      %s506 = scalar_lea.vmem %s7, %s505
      // Predicated region
      $region49: #{tpu_custom_call.1} parent=47 // pred_check
        %p507 = pneg %p188
      $region50: #{tpu_custom_call.1} parent=47 // pred_check_branch
        %509 = sbr.rel (%p507) target = $region52
      $region51: #{tpu_custom_call.1} parent=47 // pred_region
        %s510 = smul.u32 2, %s18
      $region52: #{tpu_custom_call.1} parent=47 // pred_fallthru
        _
    $region48: #{tpu_custom_call.1} parent=5 // pred_fallthru
      _
    %p511 = scmp.le.s32.totalorder 2, %s13
    // Predicated region
    $region53: #{tpu_custom_call.1} parent=5 // pred_check
      %p512 = pneg %p511
    $region54: #{tpu_custom_call.1} parent=5 // pred_check_branch
      %514 = sbr.rel (%p512) target = $region56
    $region55: #{tpu_custom_call.1} parent=5 // pred_region
      %s515 = ssub.s32 %s13, 2
      // Predicated region
      $region57: #{tpu_custom_call.1} parent=55 // pred_check
        %p516 = pneg %p194
      $region58: #{tpu_custom_call.1} parent=55 // pred_check_branch
        %518 = sbr.rel (%p516) target = $region60
      $region59: #{tpu_custom_call.1} parent=55 // pred_region
        %s519 = smul.u32 2, %s19
        %p520 = scmp.lt.s32.totalorder %s519, 3
        %s521 = scalar_select %p520, %s519, 3
        %s522 = smul.addr %s521, 8
        %s523 = scalar_lea.vmem %s7, %s522
      $region60: #{tpu_custom_call.1} parent=55 // pred_fallthru
        _
    $region56: #{tpu_custom_call.1} parent=5 // pred_fallthru
      _
  $region6: #{tpu_custom_call.1} parent=0 // loop_footer
    %s17 = sadd.s32 1, %s13
  $region7: #{tpu_custom_call.1} parent=0 // loop_footer_branch
    %12 = sbr.rel target = $region3
  $region8: #{tpu_custom_call.1} parent=0 // loop_exit
    _

</llo_original>
